<compile_context>
chip_gen: v7x
topology: tpu7x:2x2x1
jax: 0.10.0
libtpu: 0.0.40
codegen_flags: <defaults>
</compile_context>

<pallas_src>
import functools

import jax
import jax.numpy as jnp
from jax import lax
from jax.experimental import pallas as pl
from jax.experimental.pallas import tpu as pltpu

# model hyper-parameters (from the PyTorch module)
EMB1 = 15          # embedding_size1
EMB2 = 9           # embedding_size2
LIN1 = 100         # linear_size1
LIN2 = 4           # linear_size2
HEADS = 3
GAT_SLOPE = 0.2    # GATConv attention leaky-relu slope
LRELU_SLOPE = 0.01 # F.leaky_relu default
BN_EPS = 1e-5
NEG_BIG = -1e30
MAX_TILE_ROWS = 256


def _round_up(x, m):
    return ((x + m - 1) // m) * m


def _leaky(x, slope):
    # max-form leaky relu (valid for 0 < slope < 1): 2 VALU ops vs cmp+mul+select.
    return jnp.maximum(x, slope * x)


def _pack_params(named):
    """Pack small 2-D f32 params into one array; returns (packed, {name: (row, nrows, ncols)})."""
    arrays = [(name, jnp.asarray(a, jnp.float32)) for name, a in named]
    width = max(int(a.shape[1]) for _, a in arrays)
    parts, offs, r = [], {}, 0
    for name, a in arrays:
        offs[name] = (r, int(a.shape[0]), int(a.shape[1]))
        parts.append(jnp.pad(a, ((0, 0), (0, width - int(a.shape[1])))))
        r += int(a.shape[0])
    return jnp.concatenate(parts, axis=0), offs


def _unpack(packed, offs, name, ncols=None):
    r, nr, nc = offs[name]
    if ncols is not None:
        nc = ncols
    return packed[r:r + nr, 0:nc]


def _vmem_limit_bytes():
    cap = None
    try:
        cap = int(pltpu.get_tpu_info().vmem_capacity_bytes)
    except Exception:
        cap = None
    if cap is None:
        try:
            kind = jax.devices()[0].device_kind.lower()
        except Exception:
            kind = ""
        cap = 64 * 1024 * 1024 if "v7" in kind else 128 * 1024 * 1024
    # leave ~8 MiB headroom for compiler-internal scratch; cap at 110 MiB on 128 MiB parts
    return int(max(32 * 1024 * 1024, min(cap - 8 * 1024 * 1024, 110 * 1024 * 1024)))


def _bf16_exp_ok():
    # bf16 EUP exists on v6e / v7x; keep f32 exp on v5e and older.
    try:
        kind = jax.devices()[0].device_kind.lower()
    except Exception:
        return False
    return ("v6" in kind) or ("v7" in kind)


# --------------------------------------------------------------------------------------
# stage 1: GATConv (3 heads) + head_transform, row-tiled over target nodes
# --------------------------------------------------------------------------------------
def _gat_kernel(x_ref, adj_ref, pa_ref, h1_ref, *, offs, tile, use_bf16_exp):
    i = pl.program_id(0)
    x = x_ref[...]                                    # (N, Fin) f32, same block every step
    adj_t = adj_ref[...]                              # (tile, N) bf16 row tile (pipelined)
    pa = pa_ref[...]

    w_gat = _unpack(pa, offs, "w_gat")                # (Fin, 45)
    w_ht16 = _unpack(pa, offs, "w_ht", ncols=EMB1 + 1)  # (45, 16), column 15 is zero padding
    asrc = _unpack(pa, offs, "att_src")               # (3, 15)
    adst = _unpack(pa, offs, "att_dst")               # (3, 15)
    b_ht = _unpack(pa, offs, "b_ht")                  # (1, 15) head_transform bias (+ folded GAT bias)
    aug = _unpack(pa, offs, "aug", ncols=EMB1 + 1)    # (1, 16) one-hot at column 15

    row0 = pl.multiple_of(i * tile, 8)
    x_t = x_ref[pl.ds(row0, tile), :]                 # (tile, Fin) target rows of this tile

    # GAT input projection, hoisted out of the head loop
    xp_all = jnp.dot(x, w_gat, preferred_element_type=jnp.float32)    # (N, 45)
    xp_t = jnp.dot(x_t, w_gat, preferred_element_type=jnp.float32)    # (tile, 45)

    h1 = jnp.zeros((tile, EMB1), jnp.float32) + b_ht
    for h in range(HEADS):
        c0 = h * EMB1
        xph = xp_all[:, c0:c0 + EMB1]                                  # (N, 15)
        # attention logits: target score (tile,1) + source score (1,N); no (N,N) outer product
        a_src = lax.dot_general(asrc[h:h + 1, :], xph,
                                dimension_numbers=(((1,), (1,)), ((), ())),
                                preferred_element_type=jnp.float32)    # (1, N)
        a_dst = jnp.sum(xp_t[:, c0:c0 + EMB1] * adst[h:h + 1, :],
                        axis=-1, keepdims=True)                         # (tile, 1)
        e = _leaky(a_dst + a_src, GAT_SLOPE)                            # (tile, N)
        # mask recomputed per head (cheap compare) so no (tile,N) bool stays live across heads
        e = jnp.where(adj_t > 0, e, NEG_BIG)
        e = e - jnp.max(e, axis=-1, keepdims=True)
        if use_bf16_exp:
            p = jnp.exp(e.astype(jnp.bfloat16))                         # bf16 EUP (v6e/v7x)
        else:
            p = jnp.exp(e).astype(jnp.bfloat16)                         # v5e path
        # value projection with head_transform folded in; the appended ones column makes the
        # softmax denominator come out of the same MXU matmul (no extra (tile,N) VPU reduce)
        vh = (jnp.dot(xph, w_ht16[c0:c0 + EMB1, :],
                      preferred_element_type=jnp.float32) + aug).astype(jnp.bfloat16)  # (N, 16)
        pv = jnp.dot(p, vh, preferred_element_type=jnp.float32)         # (tile, 16)
        h1 = h1 + pv[:, :EMB1] * pl.reciprocal(pv[:, EMB1:EMB1 + 1], approx=True)
    h1_ref[...] = h1


# --------------------------------------------------------------------------------------
# stage 2: BatchNorm1 (folded scale/shift) + GCNConv propagation, row-tiled
# --------------------------------------------------------------------------------------
def _gcn_kernel(h1d_ref, adj_ref, pb_ref, h2_ref, *, offs, tile):
    i = pl.program_id(0)
    h1d = h1d_ref[...]                                # (N, 16): [:, :15] = h1, [:, 15] = dinv
    adj_t = adj_ref[...]                              # (tile, N) bf16
    pb = pb_ref[...]

    w_gcn = _unpack(pb, offs, "w_gcn")                # (15, 9)
    b_gcn = _unpack(pb, offs, "b_gcn")                # (1, 9)
    scale1 = _unpack(pb, offs, "scale1")              # (1, 15)
    shift1 = _unpack(pb, offs, "shift1")              # (1, 15)

    h1n = h1d[:, 0:EMB1] * scale1 + shift1            # BatchNorm1 normalize (stats from pass 1)
    dinv = h1d[:, EMB1:EMB1 + 1]                      # (N, 1)
    # source-side scaled projection; (N,15)x(15,9) is tiny vs the (tile,N) propagation below
    h2a = (jnp.dot(h1n, w_gcn, preferred_element_type=jnp.float32) * dinv).astype(jnp.bfloat16)

    row0 = pl.multiple_of(i * tile, 8)
    dinv_t = h1d_ref[pl.ds(row0, tile), pl.ds(EMB1, 1)]     # (tile, 1) target-row scaling
    h2_ref[...] = (jnp.dot(adj_t, h2a, preferred_element_type=jnp.float32) * dinv_t + b_gcn)


# --------------------------------------------------------------------------------------
# stage 3: BatchNorm2 + MLP + readout + mu/logstd (small single block)
# --------------------------------------------------------------------------------------
def _tail_kernel(h2_ref, emask_ref, pool_ref, pc_ref, out_ref, *, offs, n_real):
    h2 = h2_ref[...]                                  # (N_pad, 9)
    emask = emask_ref[...]                            # (N_pad, n_mols*4)
    pool = pool_ref[...]                              # (batch, N_pad)
    pc = pc_ref[...]

    g2 = _unpack(pc, offs, "g2")
    be2 = _unpack(pc, offs, "be2")
    w_l1 = _unpack(pc, offs, "w_l1")
    b_l1 = _unpack(pc, offs, "b_l1")
    w_l2 = _unpack(pc, offs, "w_l2")
    b_l2 = _unpack(pc, offs, "b_l2")
    w_t = _unpack(pc, offs, "w_t")
    b_t = _unpack(pc, offs, "b_t")
    w_muls = _unpack(pc, offs, "w_muls")
    b_muls = _unpack(pc, offs, "b_muls")
    tile_mat = _unpack(pc, offs, "tile_mat")

    n_pad = h2.shape[0]
    valid = (lax.broadcasted_iota(jnp.int32, (n_pad, 1), 0) < n_real).astype(jnp.float32)
    inv_n = 1.0 / float(n_real)

    # BatchNorm2 (training-mode batch statistics, biased variance, real rows only)
    m2 = jnp.sum(h2 * valid, axis=0, keepdims=True) * inv_n
    d = (h2 - m2) * valid
    v2 = jnp.sum(d * d, axis=0, keepdims=True) * inv_n
    h2n = (h2 - m2) * lax.rsqrt(v2 + BN_EPS) * g2 + be2

    h3 = _leaky(jnp.dot(h2n, w_l1, preferred_element_type=jnp.float32) + b_l1, LRELU_SLOPE)
    h4 = _leaky(jnp.dot(h3, w_l2, preferred_element_type=jnp.float32) + b_l2, LRELU_SLOPE)  # (N, 4)

    # readout reshape (N,4) -> (batch, n_mols*4) expressed via static matmuls (no in-kernel reshape)
    h4e = jnp.dot(h4, tile_mat, preferred_element_type=jnp.float32) * emask
    xg = jnp.dot(pool, h4e, preferred_element_type=jnp.float32)        # (batch, n_mols*4)
    t = _leaky(jnp.dot(xg, w_t, preferred_element_type=jnp.float32) + b_t, LRELU_SLOPE)
    out_ref[...] = jnp.dot(t, w_muls, preferred_element_type=jnp.float32) + b_muls


# --------------------------------------------------------------------------------------
# parameters
# --------------------------------------------------------------------------------------
def init_params(key, in_channels, out_channels, n_mols):
    ks = jax.random.split(key, 16)

    def rnd(k, shape, scale=0.1):
        return scale * jax.random.normal(k, shape, jnp.float32)

    return {
        # GATConv(in_channels, 15, heads=3)
        "w_gat": rnd(ks[0], (in_channels, HEADS * EMB1)),
        "att_src": rnd(ks[1], (HEADS, EMB1)),
        "att_dst": rnd(ks[2], (HEADS, EMB1)),
        "b_gat": jnp.zeros((1, HEADS * EMB1), jnp.float32),
        # head_transform Linear(45, 15)
        "w_ht": rnd(ks[3], (HEADS * EMB1, EMB1)),
        "b_ht": rnd(ks[4], (1, EMB1)),
        # BatchNorm(15)
        "g1": jnp.ones((1, EMB1), jnp.float32),
        "be1": jnp.zeros((1, EMB1), jnp.float32),
        # GCNConv(15, 9)
        "w_gcn": rnd(ks[5], (EMB1, EMB2)),
        "b_gcn": jnp.zeros((1, EMB2), jnp.float32),
        # BatchNorm(9)
        "g2": jnp.ones((1, EMB2), jnp.float32),
        "be2": jnp.zeros((1, EMB2), jnp.float32),
        # linear1 (9,100), linear2 (100,4)
        "w_l1": rnd(ks[6], (EMB2, LIN1)),
        "b_l1": rnd(ks[7], (1, LIN1)),
        "w_l2": rnd(ks[8], (LIN1, LIN2)),
        "b_l2": rnd(ks[9], (1, LIN2)),
        # transform (n_mols*4, out), mu, logstd
        "w_t": rnd(ks[10], (LIN2 * n_mols, out_channels)),
        "b_t": rnd(ks[11], (1, out_channels)),
        "w_mu": rnd(ks[12], (out_channels, out_channels)),
        "b_mu": jnp.zeros((1, out_channels), jnp.float32),
        "w_ls": rnd(ks[14], (out_channels, out_channels)),
        "b_ls": jnp.zeros((1, out_channels), jnp.float32),
    }


# --------------------------------------------------------------------------------------
# forward
# --------------------------------------------------------------------------------------
def vgcn_encoder_s2_forward(x, edge_index, params, n_mols, out_channels):
    n = int(x.shape[0])
    fin = int(x.shape[1])
    batch_size = n // n_mols

    # row-block tiling (pad N to the tile boundary; padded rows are masked out of BN / readout)
    if n <= MAX_TILE_ROWS:
        tile = _round_up(max(n, 8), 8)
        n_pad = tile
    else:
        tile = MAX_TILE_ROWS
        n_pad = _round_up(n, tile)
    num_tiles = n_pad // tile

    vmem_limit = _vmem_limit_bytes()
    use_bf16_exp = _bf16_exp_ok()

    # dense adjacency built directly in bf16, self loops folded into the same scatter:
    # adj[i, j] = 1 iff edge j -> i (PyG source->target) or i == j.
    diag = jnp.arange(n, dtype=edge_index.dtype)
    rows = jnp.concatenate([edge_index[1], diag])
    cols = jnp.concatenate([edge_index[0], diag])
    adj = jnp.zeros((n_pad, n_pad), jnp.bfloat16).at[rows, cols].set(jnp.bfloat16(1.0))

    x_p = jnp.zeros((n_pad, fin), jnp.float32).at[:n, :].set(x.astype(jnp.float32))

    # symmetric-normalization degrees computed once here (no in-kernel adj @ ones);
    # padded rows get dinv = 0 so their h2 stays finite and is masked downstream.
    deg = jnp.sum(adj, axis=1, dtype=jnp.float32)[:, None]
    dinv = jnp.where(deg > 0, lax.rsqrt(jnp.maximum(deg, 1.0)), 0.0)

    # ---- stage 1: GAT + head_transform (row-tiled, parallel) ----
    b_ht_eff = params["b_ht"] + params["b_gat"] @ params["w_ht"]     # GAT bias folded through W_ht
    aug = jnp.zeros((1, EMB1 + 1), jnp.float32).at[0, EMB1].set(1.0)
    pa, offs_a = _pack_params([
        ("w_gat", params["w_gat"]),
        ("w_ht", params["w_ht"]),
        ("att_src", params["att_src"]),
        ("att_dst", params["att_dst"]),
        ("b_ht", b_ht_eff),
        ("aug", aug),
    ])
    h1 = pl.pallas_call(
        functools.partial(_gat_kernel, offs=offs_a, tile=tile, use_bf16_exp=use_bf16_exp),
        grid=(num_tiles,),
        in_specs=[
            pl.BlockSpec((n_pad, fin), lambda i: (0, 0)),
            pl.BlockSpec((tile, n_pad), lambda i: (i, 0)),
            pl.BlockSpec(pa.shape, lambda i: (0, 0)),
        ],
        out_specs=pl.BlockSpec((tile, EMB1), lambda i: (i, 0)),
        out_shape=jax.ShapeDtypeStruct((n_pad, EMB1), jnp.float32),
        compiler_params=pltpu.CompilerParams(
            dimension_semantics=("parallel",), vmem_limit_bytes=vmem_limit),
    )(x_p, adj, pa)

    # ---- BatchNorm1 statistics (2-pass stats/normalize split; tiny (N,15) reduction) ----
    h1r = h1[:n]
    m1 = jnp.mean(h1r, axis=0, keepdims=True)
    v1 = jnp.mean((h1r - m1) ** 2, axis=0, keepdims=True)
    scale1 = params["g1"] * lax.rsqrt(v1 + BN_EPS)
    shift1 = params["be1"] - m1 * scale1

    # ---- stage 2: GCNConv propagation (row-tiled, parallel) ----
    h1d = jnp.concatenate([h1, dinv], axis=1)                       # (n_pad, 16)
    pb, offs_b = _pack_params([
        ("w_gcn", params["w_gcn"]),
        ("b_gcn", params["b_gcn"]),
        ("scale1", scale1),
        ("shift1", shift1),
    ])
    h2 = pl.pallas_call(
        functools.partial(_gcn_kernel, offs=offs_b, tile=tile),
        grid=(num_tiles,),
        in_specs=[
            pl.BlockSpec((n_pad, EMB1 + 1), lambda i: (0, 0)),
            pl.BlockSpec((tile, n_pad), lambda i: (i, 0)),
            pl.BlockSpec(pb.shape, lambda i: (0, 0)),
        ],
        out_specs=pl.BlockSpec((tile, EMB2), lambda i: (i, 0)),
        out_shape=jax.ShapeDtypeStruct((n_pad, EMB2), jnp.float32),
        compiler_params=pltpu.CompilerParams(
            dimension_semantics=("parallel",), vmem_limit_bytes=vmem_limit),
    )(h1d, adj, pb)

    # ---- stage 3: BN2 + MLP + readout + mu/logstd ----
    node_ids = jnp.arange(n_pad, dtype=jnp.int32)
    lane_ids = jnp.arange(n_mols * LIN2, dtype=jnp.int32)
    pool = (node_ids[None, :] // n_mols ==
            jnp.arange(batch_size, dtype=jnp.int32)[:, None]).astype(jnp.float32)   # (batch, n_pad)
    emask = ((node_ids % n_mols)[:, None] ==
             (lane_ids // LIN2)[None, :]).astype(jnp.float32)                        # (n_pad, n_mols*4)
    tile_mat = (jnp.arange(LIN2, dtype=jnp.int32)[:, None] ==
                (lane_ids % LIN2)[None, :]).astype(jnp.float32)                      # (4, n_mols*4)

    w_muls = jnp.concatenate([params["w_mu"], params["w_ls"]], axis=1)
    b_muls = jnp.concatenate([params["b_mu"], params["b_ls"]], axis=1)
    pc, offs_c = _pack_params([
        ("g2", params["g2"]), ("be2", params["be2"]),
        ("w_l1", params["w_l1"]), ("b_l1", params["b_l1"]),
        ("w_l2", params["w_l2"]), ("b_l2", params["b_l2"]),
        ("w_t", params["w_t"]), ("b_t", params["b_t"]),
        ("w_muls", w_muls), ("b_muls", b_muls),
        ("tile_mat", tile_mat),
    ])

    vmem = pl.BlockSpec(memory_space=pltpu.MemorySpace.VMEM)
    muls = pl.pallas_call(
        functools.partial(_tail_kernel, offs=offs_c, n_real=n),
        out_shape=jax.ShapeDtypeStruct((batch_size, 2 * out_channels), jnp.float32),
        in_specs=[vmem] * 4,
        out_specs=vmem,
        compiler_params=pltpu.CompilerParams(vmem_limit_bytes=vmem_limit),
    )(h2, emask, pool, pc)

    mu = muls[:, :out_channels]
    logstd = muls[:, out_channels:]
    return mu, logstd, edge_index


if __name__ == "__main__":
    in_channels = 8
    out_channels = 16
    batch_size = 2
    n_mols = 4
    n_nodes = batch_size * n_mols

    key = jax.random.PRNGKey(0)
    kx, kp = jax.random.split(key)

    x = jax.random.normal(kx, (n_nodes, in_channels), jnp.float32)

    # deterministic bidirectional ring graph (no self loops, no duplicate edges)
    idx = jnp.arange(n_nodes, dtype=jnp.int32)
    src = jnp.concatenate([idx, (idx + 1) % n_nodes])
    dst = jnp.concatenate([(idx + 1) % n_nodes, idx])
    edge_index = jnp.stack([src, dst]).astype(jnp.int32)   # (2, E)

    params = init_params(kp, in_channels, out_channels, n_mols)

    mu, logstd, z = vgcn_encoder_s2_forward(x, edge_index, params, n_mols, out_channels)
    jax.block_until_ready((mu, logstd, z))

    assert mu.shape == (batch_size, out_channels)
    assert logstd.shape == (batch_size, out_channels)
    assert z.shape == edge_index.shape
    assert bool(jnp.all(jnp.isfinite(mu))) and bool(jnp.all(jnp.isfinite(logstd)))

    print("KERNEL_OK")
</pallas_src>

<mosaic_0001>
module attributes {stable_mosaic.version = 11 : i64} {
  func.func @_gat_kernel(%arg0: i32, %arg1: memref<8x8xf32, #tpu.memory_space<vmem>>, %arg2: memref<8x8xbf16, #tpu.memory_space<vmem>>, %arg3: memref<61x45xf32, #tpu.memory_space<vmem>>, %arg4: memref<8x15xf32, #tpu.memory_space<vmem>>) attributes {dimension_semantics = [#tpu.dimension_semantics<parallel>], iteration_bounds = array<i64: 1>, scalar_prefetch = 0 : i64, scratch_operands = 0 : i64, tpu.core_type = #tpu.core_type<tc>, window_params = [{pipeline_mode = #tpu.pipeline_mode<synchronous>, transform_indices = @transform_0, window_bounds = array<i64: 8, 8>}, {transform_indices = @transform_1, window_bounds = array<i64: 8, 8>}, {pipeline_mode = #tpu.pipeline_mode<synchronous>, transform_indices = @transform_2, window_bounds = array<i64: 61, 45>}, {transform_indices = @transform_3, window_bounds = array<i64: 8, 15>}]} {
    %c0 = arith.constant 0 : index
    %c0_0 = arith.constant 0 : index
    %0 = vector.load %arg1[%c0, %c0_0] : memref<8x8xf32, #tpu.memory_space<vmem>>, vector<8x8xf32>
    %c0_1 = arith.constant 0 : index
    %c0_2 = arith.constant 0 : index
    %1 = vector.load %arg2[%c0_1, %c0_2] : memref<8x8xbf16, #tpu.memory_space<vmem>>, vector<8x8xbf16>
    %c0_3 = arith.constant 0 : index
    %c0_4 = arith.constant 0 : index
    %2 = vector.load %arg3[%c0_3, %c0_4] : memref<61x45xf32, #tpu.memory_space<vmem>>, vector<61x45xf32>
    %3 = vector.extract_strided_slice %2 {offsets = [0, 0], sizes = [8, 45], strides = [1, 1]} : vector<61x45xf32> to vector<8x45xf32>
    %4 = vector.extract_strided_slice %2 {offsets = [8, 0], sizes = [45, 16], strides = [1, 1]} : vector<61x45xf32> to vector<45x16xf32>
    %5 = vector.extract_strided_slice %2 {offsets = [53, 0], sizes = [3, 15], strides = [1, 1]} : vector<61x45xf32> to vector<3x15xf32>
    %6 = vector.extract_strided_slice %2 {offsets = [56, 0], sizes = [3, 15], strides = [1, 1]} : vector<61x45xf32> to vector<3x15xf32>
    %7 = vector.extract_strided_slice %2 {offsets = [59, 0], sizes = [1, 15], strides = [1, 1]} : vector<61x45xf32> to vector<1x15xf32>
    %8 = vector.extract_strided_slice %2 {offsets = [60, 0], sizes = [1, 16], strides = [1, 1]} : vector<61x45xf32> to vector<1x16xf32>
    %c8_i32 = arith.constant 8 : i32
    %9 = arith.muli %arg0, %c8_i32 : i32
    %10 = tpu.assume_multiple %9, 8 : i32
    %11 = arith.index_cast %10 : i32 to index
    %c0_5 = arith.constant 0 : index
    %12 = vector.load %arg1[%11, %c0_5] : memref<8x8xf32, #tpu.memory_space<vmem>>, vector<8x8xf32>
    %cst = arith.constant dense<0.000000e+00> : vector<8x45xf32>
    %13 = tpu.matmul %0, %3, %cst {dimension_numbers = #tpu.dot_dimension_numbers<[1], [0], [0], [1], [0, 0, 1, 1], [], []>} : vector<8x8xf32>, vector<8x45xf32>, vector<8x45xf32> -> vector<8x45xf32>
    %cst_6 = arith.constant dense<0.000000e+00> : vector<8x45xf32>
    %14 = tpu.matmul %12, %3, %cst_6 {dimension_numbers = #tpu.dot_dimension_numbers<[1], [0], [0], [1], [0, 0, 1, 1], [], []>} : vector<8x8xf32>, vector<8x45xf32>, vector<8x45xf32> -> vector<8x45xf32>
    %cst_7 = arith.constant 0.000000e+00 : f32
    %15 = vector.broadcast %cst_7 : f32 to vector<8x15xf32>
    %16 = vector.broadcast %7 : vector<1x15xf32> to vector<8x15xf32>
    %17 = arith.addf %15, %16 : vector<8x15xf32>
    %18 = vector.extract_strided_slice %13 {offsets = [0, 0], sizes = [8, 15], strides = [1, 1]} : vector<8x45xf32> to vector<8x15xf32>
    %19 = vector.extract_strided_slice %5 {offsets = [0, 0], sizes = [1, 15], strides = [1, 1]} : vector<3x15xf32> to vector<1x15xf32>
    %cst_8 = arith.constant dense<0.000000e+00> : vector<1x8xf32>
    %20 = tpu.matmul %19, %18, %cst_8 {dimension_numbers = #tpu.dot_dimension_numbers<[1], [1], [0], [0], [0, 0, 1, 0], [], []>} : vector<1x15xf32>, vector<8x15xf32>, vector<1x8xf32> -> vector<1x8xf32>
    %21 = vector.extract_strided_slice %14 {offsets = [0, 0], sizes = [8, 15], strides = [1, 1]} : vector<8x45xf32> to vector<8x15xf32>
    %22 = vector.extract_strided_slice %6 {offsets = [0, 0], sizes = [1, 15], strides = [1, 1]} : vector<3x15xf32> to vector<1x15xf32>
    %23 = vector.broadcast %22 : vector<1x15xf32> to vector<8x15xf32>
    %24 = arith.mulf %21, %23 : vector<8x15xf32>
    %cst_9 = arith.constant dense<0.000000e+00> : vector<8xf32>
    %25 = vector.multi_reduction <add>, %24, %cst_9 [1] : vector<8x15xf32> to vector<8xf32>
    %26 = vector.shape_cast %25 : vector<8xf32> to vector<8x1xf32>
    %27 = vector.broadcast %26 : vector<8x1xf32> to vector<8x8xf32>
    %28 = vector.broadcast %20 : vector<1x8xf32> to vector<8x8xf32>
    %29 = arith.addf %27, %28 : vector<8x8xf32>
    %cst_10 = arith.constant 2.000000e-01 : f32
    %30 = vector.broadcast %cst_10 : f32 to vector<8x8xf32>
    %31 = arith.mulf %30, %29 : vector<8x8xf32>
    %32 = arith.maximumf %29, %31 : vector<8x8xf32>
    %cst_11 = arith.constant 0.000000e+00 : bf16
    %33 = vector.broadcast %cst_11 : bf16 to vector<8x8xbf16>
    %34 = arith.cmpf ogt, %1, %33 : vector<8x8xbf16>
    %cst_12 = arith.constant -1.000000e+30 : f32
    %35 = vector.broadcast %cst_12 : f32 to vector<8x8xf32>
    %36 = arith.select %34, %32, %35 : vector<8x8xi1>, vector<8x8xf32>
    %cst_13 = arith.constant dense<0xFF800000> : vector<8xf32>
    %37 = vector.multi_reduction <maximumf>, %36, %cst_13 [1] : vector<8x8xf32> to vector<8xf32>
    %38 = vector.shape_cast %37 : vector<8xf32> to vector<8x1xf32>
    %39 = vector.broadcast %38 : vector<8x1xf32> to vector<8x8xf32>
    %40 = arith.subf %36, %39 : vector<8x8xf32>
    %41 = math.exp %40 : vector<8x8xf32>
    %42 = arith.truncf %41 : vector<8x8xf32> to vector<8x8xbf16>
    %43 = vector.extract_strided_slice %4 {offsets = [0, 0], sizes = [15, 16], strides = [1, 1]} : vector<45x16xf32> to vector<15x16xf32>
    %cst_14 = arith.constant dense<0.000000e+00> : vector<8x16xf32>
    %44 = tpu.matmul %18, %43, %cst_14 {dimension_numbers = #tpu.dot_dimension_numbers<[1], [0], [0], [1], [0, 0, 1, 1], [], []>} : vector<8x15xf32>, vector<15x16xf32>, vector<8x16xf32> -> vector<8x16xf32>
    %45 = vector.broadcast %8 : vector<1x16xf32> to vector<8x16xf32>
    %46 = arith.addf %44, %45 : vector<8x16xf32>
    %47 = arith.truncf %46 : vector<8x16xf32> to vector<8x16xbf16>
    %cst_15 = arith.constant dense<0.000000e+00> : vector<8x16xf32>
    %48 = tpu.matmul %42, %47, %cst_15 {dimension_numbers = #tpu.dot_dimension_numbers<[1], [0], [0], [1], [0, 0, 1, 1], [], []>} : vector<8x8xbf16>, vector<8x16xbf16>, vector<8x16xf32> -> vector<8x16xf32>
    %49 = vector.extract_strided_slice %48 {offsets = [0, 0], sizes = [8, 15], strides = [1, 1]} : vector<8x16xf32> to vector<8x15xf32>
    %50 = vector.extract_strided_slice %48 {offsets = [0, 15], sizes = [8, 1], strides = [1, 1]} : vector<8x16xf32> to vector<8x1xf32>
    %51 = tpu.reciprocal %50 {approx = true} : vector<8x1xf32> -> vector<8x1xf32>
    %52 = vector.broadcast %51 : vector<8x1xf32> to vector<8x15xf32>
    %53 = arith.mulf %49, %52 : vector<8x15xf32>
    %54 = arith.addf %17, %53 : vector<8x15xf32>
    %55 = vector.extract_strided_slice %13 {offsets = [0, 15], sizes = [8, 15], strides = [1, 1]} : vector<8x45xf32> to vector<8x15xf32>
    %56 = vector.extract_strided_slice %5 {offsets = [1, 0], sizes = [1, 15], strides = [1, 1]} : vector<3x15xf32> to vector<1x15xf32>
    %cst_16 = arith.constant dense<0.000000e+00> : vector<1x8xf32>
    %57 = tpu.matmul %56, %55, %cst_16 {dimension_numbers = #tpu.dot_dimension_numbers<[1], [1], [0], [0], [0, 0, 1, 0], [], []>} : vector<1x15xf32>, vector<8x15xf32>, vector<1x8xf32> -> vector<1x8xf32>
    %58 = vector.extract_strided_slice %14 {offsets = [0, 15], sizes = [8, 15], strides = [1, 1]} : vector<8x45xf32> to vector<8x15xf32>
    %59 = vector.extract_strided_slice %6 {offsets = [1, 0], sizes = [1, 15], strides = [1, 1]} : vector<3x15xf32> to vector<1x15xf32>
    %60 = vector.broadcast %59 : vector<1x15xf32> to vector<8x15xf32>
    %61 = arith.mulf %58, %60 : vector<8x15xf32>
    %cst_17 = arith.constant dense<0.000000e+00> : vector<8xf32>
    %62 = vector.multi_reduction <add>, %61, %cst_17 [1] : vector<8x15xf32> to vector<8xf32>
    %63 = vector.shape_cast %62 : vector<8xf32> to vector<8x1xf32>
    %64 = vector.broadcast %63 : vector<8x1xf32> to vector<8x8xf32>
    %65 = vector.broadcast %57 : vector<1x8xf32> to vector<8x8xf32>
    %66 = arith.addf %64, %65 : vector<8x8xf32>
    %cst_18 = arith.constant 2.000000e-01 : f32
    %67 = vector.broadcast %cst_18 : f32 to vector<8x8xf32>
    %68 = arith.mulf %67, %66 : vector<8x8xf32>
    %69 = arith.maximumf %66, %68 : vector<8x8xf32>
    %cst_19 = arith.constant 0.000000e+00 : bf16
    %70 = vector.broadcast %cst_19 : bf16 to vector<8x8xbf16>
    %71 = arith.cmpf ogt, %1, %70 : vector<8x8xbf16>
    %cst_20 = arith.constant -1.000000e+30 : f32
    %72 = vector.broadcast %cst_20 : f32 to vector<8x8xf32>
    %73 = arith.select %71, %69, %72 : vector<8x8xi1>, vector<8x8xf32>
    %cst_21 = arith.constant dense<0xFF800000> : vector<8xf32>
    %74 = vector.multi_reduction <maximumf>, %73, %cst_21 [1] : vector<8x8xf32> to vector<8xf32>
    %75 = vector.shape_cast %74 : vector<8xf32> to vector<8x1xf32>
    %76 = vector.broadcast %75 : vector<8x1xf32> to vector<8x8xf32>
    %77 = arith.subf %73, %76 : vector<8x8xf32>
    %78 = math.exp %77 : vector<8x8xf32>
    %79 = arith.truncf %78 : vector<8x8xf32> to vector<8x8xbf16>
    %80 = vector.extract_strided_slice %4 {offsets = [15, 0], sizes = [15, 16], strides = [1, 1]} : vector<45x16xf32> to vector<15x16xf32>
    %cst_22 = arith.constant dense<0.000000e+00> : vector<8x16xf32>
    %81 = tpu.matmul %55, %80, %cst_22 {dimension_numbers = #tpu.dot_dimension_numbers<[1], [0], [0], [1], [0, 0, 1, 1], [], []>} : vector<8x15xf32>, vector<15x16xf32>, vector<8x16xf32> -> vector<8x16xf32>
    %82 = vector.broadcast %8 : vector<1x16xf32> to vector<8x16xf32>
    %83 = arith.addf %81, %82 : vector<8x16xf32>
    %84 = arith.truncf %83 : vector<8x16xf32> to vector<8x16xbf16>
    %cst_23 = arith.constant dense<0.000000e+00> : vector<8x16xf32>
    %85 = tpu.matmul %79, %84, %cst_23 {dimension_numbers = #tpu.dot_dimension_numbers<[1], [0], [0], [1], [0, 0, 1, 1], [], []>} : vector<8x8xbf16>, vector<8x16xbf16>, vector<8x16xf32> -> vector<8x16xf32>
    %86 = vector.extract_strided_slice %85 {offsets = [0, 0], sizes = [8, 15], strides = [1, 1]} : vector<8x16xf32> to vector<8x15xf32>
    %87 = vector.extract_strided_slice %85 {offsets = [0, 15], sizes = [8, 1], strides = [1, 1]} : vector<8x16xf32> to vector<8x1xf32>
    %88 = tpu.reciprocal %87 {approx = true} : vector<8x1xf32> -> vector<8x1xf32>
    %89 = vector.broadcast %88 : vector<8x1xf32> to vector<8x15xf32>
    %90 = arith.mulf %86, %89 : vector<8x15xf32>
    %91 = arith.addf %54, %90 : vector<8x15xf32>
    %92 = vector.extract_strided_slice %13 {offsets = [0, 30], sizes = [8, 15], strides = [1, 1]} : vector<8x45xf32> to vector<8x15xf32>
    %93 = vector.extract_strided_slice %5 {offsets = [2, 0], sizes = [1, 15], strides = [1, 1]} : vector<3x15xf32> to vector<1x15xf32>
    %cst_24 = arith.constant dense<0.000000e+00> : vector<1x8xf32>
    %94 = tpu.matmul %93, %92, %cst_24 {dimension_numbers = #tpu.dot_dimension_numbers<[1], [1], [0], [0], [0, 0, 1, 0], [], []>} : vector<1x15xf32>, vector<8x15xf32>, vector<1x8xf32> -> vector<1x8xf32>
    %95 = vector.extract_strided_slice %14 {offsets = [0, 30], sizes = [8, 15], strides = [1, 1]} : vector<8x45xf32> to vector<8x15xf32>
    %96 = vector.extract_strided_slice %6 {offsets = [2, 0], sizes = [1, 15], strides = [1, 1]} : vector<3x15xf32> to vector<1x15xf32>
    %97 = vector.broadcast %96 : vector<1x15xf32> to vector<8x15xf32>
    %98 = arith.mulf %95, %97 : vector<8x15xf32>
    %cst_25 = arith.constant dense<0.000000e+00> : vector<8xf32>
    %99 = vector.multi_reduction <add>, %98, %cst_25 [1] : vector<8x15xf32> to vector<8xf32>
    %100 = vector.shape_cast %99 : vector<8xf32> to vector<8x1xf32>
    %101 = vector.broadcast %100 : vector<8x1xf32> to vector<8x8xf32>
    %102 = vector.broadcast %94 : vector<1x8xf32> to vector<8x8xf32>
    %103 = arith.addf %101, %102 : vector<8x8xf32>
    %cst_26 = arith.constant 2.000000e-01 : f32
    %104 = vector.broadcast %cst_26 : f32 to vector<8x8xf32>
    %105 = arith.mulf %104, %103 : vector<8x8xf32>
    %106 = arith.maximumf %103, %105 : vector<8x8xf32>
    %cst_27 = arith.constant 0.000000e+00 : bf16
    %107 = vector.broadcast %cst_27 : bf16 to vector<8x8xbf16>
    %108 = arith.cmpf ogt, %1, %107 : vector<8x8xbf16>
    %cst_28 = arith.constant -1.000000e+30 : f32
    %109 = vector.broadcast %cst_28 : f32 to vector<8x8xf32>
    %110 = arith.select %108, %106, %109 : vector<8x8xi1>, vector<8x8xf32>
    %cst_29 = arith.constant dense<0xFF800000> : vector<8xf32>
    %111 = vector.multi_reduction <maximumf>, %110, %cst_29 [1] : vector<8x8xf32> to vector<8xf32>
    %112 = vector.shape_cast %111 : vector<8xf32> to vector<8x1xf32>
    %113 = vector.broadcast %112 : vector<8x1xf32> to vector<8x8xf32>
    %114 = arith.subf %110, %113 : vector<8x8xf32>
    %115 = math.exp %114 : vector<8x8xf32>
    %116 = arith.truncf %115 : vector<8x8xf32> to vector<8x8xbf16>
    %117 = vector.extract_strided_slice %4 {offsets = [30, 0], sizes = [15, 16], strides = [1, 1]} : vector<45x16xf32> to vector<15x16xf32>
    %cst_30 = arith.constant dense<0.000000e+00> : vector<8x16xf32>
    %118 = tpu.matmul %92, %117, %cst_30 {dimension_numbers = #tpu.dot_dimension_numbers<[1], [0], [0], [1], [0, 0, 1, 1], [], []>} : vector<8x15xf32>, vector<15x16xf32>, vector<8x16xf32> -> vector<8x16xf32>
    %119 = vector.broadcast %8 : vector<1x16xf32> to vector<8x16xf32>
    %120 = arith.addf %118, %119 : vector<8x16xf32>
    %121 = arith.truncf %120 : vector<8x16xf32> to vector<8x16xbf16>
    %cst_31 = arith.constant dense<0.000000e+00> : vector<8x16xf32>
    %122 = tpu.matmul %116, %121, %cst_31 {dimension_numbers = #tpu.dot_dimension_numbers<[1], [0], [0], [1], [0, 0, 1, 1], [], []>} : vector<8x8xbf16>, vector<8x16xbf16>, vector<8x16xf32> -> vector<8x16xf32>
    %123 = vector.extract_strided_slice %122 {offsets = [0, 0], sizes = [8, 15], strides = [1, 1]} : vector<8x16xf32> to vector<8x15xf32>
    %124 = vector.extract_strided_slice %122 {offsets = [0, 15], sizes = [8, 1], strides = [1, 1]} : vector<8x16xf32> to vector<8x1xf32>
    %125 = tpu.reciprocal %124 {approx = true} : vector<8x1xf32> -> vector<8x1xf32>
    %126 = vector.broadcast %125 : vector<8x1xf32> to vector<8x15xf32>
    %127 = arith.mulf %123, %126 : vector<8x15xf32>
    %128 = arith.addf %91, %127 : vector<8x15xf32>
    %c0_32 = arith.constant 0 : index
    %c0_33 = arith.constant 0 : index
    %129 = vector.load %arg4[%c0_32, %c0_33] : memref<8x15xf32, #tpu.memory_space<vmem>>, vector<8x15xf32>
    tpu.vector_store %arg4[%c0_32, %c0_33], %128 {strides = array<i32>} : memref<8x15xf32, #tpu.memory_space<vmem>>, vector<8x15xf32>,
    return
  }
  func.func @transform_0(%arg0: i32) -> (i32, i32) {
    %c0_i32 = arith.constant 0 : i32
    %c0_i32_0 = arith.constant 0 : i32
    %c0_i32_1 = arith.constant 0 : i32
    return %c0_i32, %c0_i32_0 : i32, i32
  }
  func.func @transform_1(%arg0: i32) -> (i32, i32) {
    %c0_i32 = arith.constant 0 : i32
    %c0_i32_0 = arith.constant 0 : i32
    return %arg0, %c0_i32 : i32, i32
  }
  func.func @transform_2(%arg0: i32) -> (i32, i32) {
    %c0_i32 = arith.constant 0 : i32
    %c0_i32_0 = arith.constant 0 : i32
    %c0_i32_1 = arith.constant 0 : i32
    return %c0_i32, %c0_i32_0 : i32, i32
  }
  func.func @transform_3(%arg0: i32) -> (i32, i32) {
    %c0_i32 = arith.constant 0 : i32
    %c0_i32_0 = arith.constant 0 : i32
    return %arg0, %c0_i32 : i32, i32
  }
}

</mosaic_0001>

<llo_original>
// kernel: tpu_custom_call.1
$region0: #{tpu_custom_call.1}
  #allocation0 [shape = 'u32[]', space=smem, size = 0x4, offset = 0x4, fixed_abs, tag = 'smem constant byte address 0x4 - core index']
  #allocation1 [shape = 'u32[144,128]{1,0:T(1,128)}', space=vmem, size = 0x12000, scoped, tag = 'internal scratch']
  %s0 = inlined_call_operand.hbm [shape: f32[8,8], index: 0, kind: input, shape index: {}]
  %s1 = inlined_call_operand.hbm [shape: bf16[8,8], index: 1, kind: input, shape index: {}]
  %s2 = inlined_call_operand.hbm [shape: f32[61,45], index: 2, kind: input, shape index: {}]
  %s3 = inlined_call_operand.hbm [shape: f32[8,15], index: 3, kind: output, shape index: {}]
  %s4 = sld [smem:[#allocation0]]
  $region34: #{tpu_custom_call.1} parent=0
    _
  %s6 = ssub.s32 1, %s4
  %s7 = scalar_select 0, %s6, %s4
  $region1: #{tpu_custom_call.1} parent=0
    #allocation2 [shape = 'u8[4096]{0}', space=vmem, size = 0x1000, scoped, tag = 'input window, operand 0, single buffered']
    #allocation3 [shape = 's32[1]{0}', space=sflag, size = 0x4, scoped, tag = 'scoped memory for tpu_custom_call.1']
    #allocation4 [shape = 's32[1]{0}', space=sflag, size = 0x4, scoped, tag = 'scoped memory for tpu_custom_call.1']
    #allocation5 [shape = 'u8[2048]{0}', space=vmem, size = 0x800, scoped, tag = 'input window, operand 1, single buffered']
    #allocation6 [shape = 's32[1]{0}', space=sflag, size = 0x4, scoped, tag = 'scoped memory for tpu_custom_call.1']
    #allocation7 [shape = 'u8[32768]{0}', space=vmem, size = 0x8000, scoped, tag = 'input window, operand 2, single buffered']
    #allocation8 [shape = 'u8[4096]{0}', space=vmem, size = 0x1000, scoped, tag = 'output window, operand 0, single buffered']
    %8 = vsyncpa [#allocation3], 0
    %9 = vsyncpa [#allocation6], 0
    %10 = vsyncpa [#allocation4], 0
    // Predicated region
    $region2: #{tpu_custom_call.1} parent=1 // pred_check
      _
    $region3: #{tpu_custom_call.1} parent=1 // pred_check_branch
      %12 = sbr.rel (0) target = $region5
    $region4: #{tpu_custom_call.1} parent=1 // pred_region
      %s14 = ssub.s32 128, 128
      %15 = vsyncadd [#allocation3], %s14
      %s17 = sshll.u32 [#allocation2], 4
      %s18 = int_to_ptr.vmem [resolvable:$true] %s17
      %20 = dma.hbm_to_vmem [thread:$0]  %s0, 128, %s18, [#allocation3]
    $region5: #{tpu_custom_call.1} parent=1 // pred_fallthru
      _
    // Predicated region
    $region6: #{tpu_custom_call.1} parent=1 // pred_check
      _
    $region7: #{tpu_custom_call.1} parent=1 // pred_check_branch
      %22 = sbr.rel (0) target = $region9
    $region8: #{tpu_custom_call.1} parent=1 // pred_region
      %s24 = ssub.s32 64, 64
      %25 = vsyncadd [#allocation6], %s24
      %s27 = sshll.u32 [#allocation5], 4
      %s28 = int_to_ptr.vmem [resolvable:$true] %s27
      %30 = dma.hbm_to_vmem [thread:$0]  %s1, 64, %s28, [#allocation6]
    $region9: #{tpu_custom_call.1} parent=1 // pred_fallthru
      _
    // Predicated region
    $region10: #{tpu_custom_call.1} parent=1 // pred_check
      _
    $region11: #{tpu_custom_call.1} parent=1 // pred_check_branch
      %32 = sbr.rel (0) target = $region13
    $region12: #{tpu_custom_call.1} parent=1 // pred_region
      %s34 = ssub.s32 1024, 1024
      %35 = vsyncadd [#allocation6], %s34
      %s36 = sshll.u32 [#allocation7], 4
      %s37 = int_to_ptr.vmem [resolvable:$true] %s36
      %42 = dma.hbm_to_vmem [thread:$0]  %s2, 1024, %s37, [#allocation6], 128, 128, 8
    $region13: #{tpu_custom_call.1} parent=1 // pred_fallthru
      _
    // Predicated region
    $region14: #{tpu_custom_call.1} parent=1 // pred_check
      _
    $region15: #{tpu_custom_call.1} parent=1 // pred_check_branch
      %44 = sbr.rel (0) target = $region17
    $region16: #{tpu_custom_call.1} parent=1 // pred_region
      %45 = dma.done [#allocation3], 128
    $region17: #{tpu_custom_call.1} parent=1 // pred_fallthru
      _
    // Predicated region
    $region18: #{tpu_custom_call.1} parent=1 // pred_check
      _
    $region19: #{tpu_custom_call.1} parent=1 // pred_check_branch
      %47 = sbr.rel (0) target = $region21
    $region20: #{tpu_custom_call.1} parent=1 // pred_region
      %48 = dma.done [#allocation6], 64
    $region21: #{tpu_custom_call.1} parent=1 // pred_fallthru
      _
    // Predicated region
    $region22: #{tpu_custom_call.1} parent=1 // pred_check
      _
    $region23: #{tpu_custom_call.1} parent=1 // pred_check_branch
      %50 = sbr.rel (0) target = $region25
    $region24: #{tpu_custom_call.1} parent=1 // pred_region
      %51 = dma.done [#allocation6], 1024
    $region25: #{tpu_custom_call.1} parent=1 // pred_fallthru
      _
    %v55 = vld [vmem:[#allocation2] sm:$0xff]
    %v56 = vld [vmem:[#allocation5] sm:$0xf]
    %v57 = vld [vmem:[#allocation7] sm:$0xff]
    %v58 = vld [vmem:[#allocation7 + $0x8] sm:$0xff]
    %v59 = vld [vmem:[#allocation7 + $0x10] sm:$0xff]
    %v60 = vld [vmem:[#allocation7 + $0x18] sm:$0xff]
    %v61 = vld [vmem:[#allocation7 + $0x20] sm:$0xff]
    %v62 = vld [vmem:[#allocation7 + $0x28] sm:$0xff]
    %v63 = vld [vmem:[#allocation7 + $0x30] sm:$0xff]
    %v64 = vld [vmem:[#allocation7 + $0x38] sm:$0x1f]
    %s65 = smul.u32 0, 8
    %s66 = scalar_lea.vmem [#allocation2], %s65
    %v67 = vld [vmem:[%s66] sm:$0xff]
    %vm68 = vcmask 64512
    %v70 = vsel %vm68, %v55, 0
    %72 = vmatprep.subr.mxu0 0.0
    %73 = vmatpush1.msra.mxu0 %v57
    %74 = vmatprep.subr.mxu0 0.0
    %75 = vmatpush1.msra.mxu0 0.0
    %76 = vmatprep.subr.mxu0 0.0
    %77 = vmatpush1.msra.mxu0 0.0
    %78 = vmatprep.subr.mxu0 0.0
    %79 = vmatpush1.msra.mxu0 0.0
    %80 = vmatprep.subr.mxu0 0.0
    %81 = vmatpush1.msra.mxu0 0.0
    %82 = vmatprep.subr.mxu0 0.0
    %83 = vmatpush1.msra.mxu0 0.0
    %84 = vmatprep.subr.mxu0 0.0
    %85 = vmatpush1.msra.mxu0 0.0
    %86 = vmatprep.subr.mxu0 0.0
    %87 = vmatpush1.msra.mxu0 0.0
    %88 = vmatprep.subr.mxu0 0.0
    %89 = vmatpush1.msra.mxu0 0.0
    %90 = vmatprep.subr.mxu0 0.0
    %91 = vmatpush1.msra.mxu0 0.0
    %92 = vmatprep.subr.mxu0 0.0
    %93 = vmatpush1.msra.mxu0 0.0
    %94 = vmatprep.subr.mxu0 0.0
    %95 = vmatpush1.msra.mxu0 0.0
    %96 = vmatprep.subr.mxu0 0.0
    %97 = vmatpush1.msra.mxu0 0.0
    %98 = vmatprep.subr.mxu0 0.0
    %99 = vmatpush1.msra.mxu0 0.0
    %100 = vmatprep.subr.mxu0 0.0
    %101 = vmatpush1.msra.mxu0 0.0
    %102 = vmatprep.subr.mxu0 0.0
    %103 = vmatpush1.msra.mxu0 0.0
    %104 = vmatprep.subr.mxu0 0.0
    %105 = vmatpush1.msra.mxu0 0.0
    %106 = vmatprep.subr.mxu0 0.0
    %107 = vmatpush1.msra.mxu0 0.0
    %108 = vmatprep.subr.mxu0 0.0
    %109 = vmatpush1.msra.mxu0 0.0
    %110 = vmatprep.subr.mxu0 0.0
    %111 = vmatpush1.msra.mxu0 0.0
    %112 = vmatprep.subr.mxu0 0.0
    %113 = vmatpush1.msra.mxu0 0.0
    %114 = vmatprep.subr.mxu0 0.0
    %115 = vmatpush1.msra.mxu0 0.0
    %116 = vmatprep.subr.mxu0 0.0
    %117 = vmatpush1.msra.mxu0 0.0
    %118 = vmatprep.subr.mxu0 0.0
    %119 = vmatpush1.msra.mxu0 0.0
    %120 = vmatprep.subr.mxu0 0.0
    %121 = vmatpush1.msra.mxu0 0.0
    %122 = vmatprep.subr.mxu0 0.0
    %123 = vmatpush1.msra.mxu0 0.0
    %124 = vmatprep.subr.mxu0 0.0
    %125 = vmatpush1.msra.mxu0 0.0
    %126 = vmatprep.subr.mxu0 0.0
    %127 = vmatpush1.msra.mxu0 0.0
    %128 = vmatprep.subr.mxu0 0.0
    %129 = vmatpush1.msra.mxu0 0.0
    %130 = vmatprep.subr.mxu0 0.0
    %131 = vmatpush1.msra.mxu0 0.0
    %132 = vmatprep.subr.mxu0 0.0
    %133 = vmatpush1.msra.mxu0 0.0
    %134 = vmatprep.subr.mxu0 0.0
    %135 = vmatpush1.msra.mxu0 0.0
    %136 = vmatprep.mubr.f32.mxu0 0.0
    %137 = vmatmul.mubr.f32.gmra.mrb[0].mxu0 %v70
    %v138 = vpop.f32.mrb[0].mxu0
    %v139 = vadd.f32 0.0, %v138
    %v140 = vpop.f32.mrb[0].mxu0
    %141 = vdwg.mxu0
    %v143 = vsel %vm68, %v67, 0
    %145 = vmatprep.subr.mxu0 0.0
    %146 = vmatpush1.msra.mxu0 %v57
    %147 = vmatprep.subr.mxu0 0.0
    %148 = vmatpush1.msra.mxu0 0.0
    %149 = vmatprep.subr.mxu0 0.0
    %150 = vmatpush1.msra.mxu0 0.0
    %151 = vmatprep.subr.mxu0 0.0
    %152 = vmatpush1.msra.mxu0 0.0
    %153 = vmatprep.subr.mxu0 0.0
    %154 = vmatpush1.msra.mxu0 0.0
    %155 = vmatprep.subr.mxu0 0.0
    %156 = vmatpush1.msra.mxu0 0.0
    %157 = vmatprep.subr.mxu0 0.0
    %158 = vmatpush1.msra.mxu0 0.0
    %159 = vmatprep.subr.mxu0 0.0
    %160 = vmatpush1.msra.mxu0 0.0
    %161 = vmatprep.subr.mxu0 0.0
    %162 = vmatpush1.msra.mxu0 0.0
    %163 = vmatprep.subr.mxu0 0.0
    %164 = vmatpush1.msra.mxu0 0.0
    %165 = vmatprep.subr.mxu0 0.0
    %166 = vmatpush1.msra.mxu0 0.0
    %167 = vmatprep.subr.mxu0 0.0
    %168 = vmatpush1.msra.mxu0 0.0
    %169 = vmatprep.subr.mxu0 0.0
    %170 = vmatpush1.msra.mxu0 0.0
    %171 = vmatprep.subr.mxu0 0.0
    %172 = vmatpush1.msra.mxu0 0.0
    %173 = vmatprep.subr.mxu0 0.0
    %174 = vmatpush1.msra.mxu0 0.0
    %175 = vmatprep.subr.mxu0 0.0
    %176 = vmatpush1.msra.mxu0 0.0
    %177 = vmatprep.subr.mxu0 0.0
    %178 = vmatpush1.msra.mxu0 0.0
    %179 = vmatprep.subr.mxu0 0.0
    %180 = vmatpush1.msra.mxu0 0.0
    %181 = vmatprep.subr.mxu0 0.0
    %182 = vmatpush1.msra.mxu0 0.0
    %183 = vmatprep.subr.mxu0 0.0
    %184 = vmatpush1.msra.mxu0 0.0
    %185 = vmatprep.subr.mxu0 0.0
    %186 = vmatpush1.msra.mxu0 0.0
    %187 = vmatprep.subr.mxu0 0.0
    %188 = vmatpush1.msra.mxu0 0.0
    %189 = vmatprep.subr.mxu0 0.0
    %190 = vmatpush1.msra.mxu0 0.0
    %191 = vmatprep.subr.mxu0 0.0
    %192 = vmatpush1.msra.mxu0 0.0
    %193 = vmatprep.subr.mxu0 0.0
    %194 = vmatpush1.msra.mxu0 0.0
    %195 = vmatprep.subr.mxu0 0.0
    %196 = vmatpush1.msra.mxu0 0.0
    %197 = vmatprep.subr.mxu0 0.0
    %198 = vmatpush1.msra.mxu0 0.0
    %199 = vmatprep.subr.mxu0 0.0
    %200 = vmatpush1.msra.mxu0 0.0
    %201 = vmatprep.subr.mxu0 0.0
    %202 = vmatpush1.msra.mxu0 0.0
    %203 = vmatprep.subr.mxu0 0.0
    %204 = vmatpush1.msra.mxu0 0.0
    %205 = vmatprep.subr.mxu0 0.0
    %206 = vmatpush1.msra.mxu0 0.0
    %207 = vmatprep.subr.mxu0 0.0
    %208 = vmatpush1.msra.mxu0 0.0
    %209 = vmatprep.mubr.f32.mxu0 0.0
    %210 = vmatmul.mubr.f32.gmra.mrb[0].mxu0 %v143
    %v211 = vpop.f32.mrb[0].mxu0
    %v212 = vadd.f32 0.0, %v211
    %v213 = vpop.f32.mrb[0].mxu0
    %214 = vdwg.mxu0
    %v215 = vlaneseq
    %v216 = vshrl.u32 %v215, 7
    %v217 = vsub.s32 3, %v216
    %v218 = vrot.slane %v64, %v217
    %v219 = vadd.f32 %v218, 0.0
    %v221 = vrot.slane %v63, 5
    %vm222 = vcmask 121856
    %v223 = vsel %vm222, %v221, 0
    %v226 = vsel %vm222, %v139, 0
    %228 = vmatprep.subr.mxu0 0.0
    %229 = vmatpush1.xpose.msra.mxu0 %v226
    %230 = vmatprep.subr.mxu0 0.0
    %231 = vmatpush1.xpose.msra.mxu0 0.0
    %232 = vmatprep.subr.mxu0 0.0
    %233 = vmatpush1.xpose.msra.mxu0 0.0
    %234 = vmatprep.subr.mxu0 0.0
    %235 = vmatpush1.xpose.msra.mxu0 0.0
    %236 = vmatprep.subr.mxu0 0.0
    %237 = vmatpush1.xpose.msra.mxu0 0.0
    %238 = vmatprep.subr.mxu0 0.0
    %239 = vmatpush1.xpose.msra.mxu0 0.0
    %240 = vmatprep.subr.mxu0 0.0
    %241 = vmatpush1.xpose.msra.mxu0 0.0
    %242 = vmatprep.subr.mxu0 0.0
    %243 = vmatpush1.xpose.msra.mxu0 0.0
    %244 = vmatprep.subr.mxu0 0.0
    %245 = vmatpush1.xpose.msra.mxu0 0.0
    %246 = vmatprep.subr.mxu0 0.0
    %247 = vmatpush1.xpose.msra.mxu0 0.0
    %248 = vmatprep.subr.mxu0 0.0
    %249 = vmatpush1.xpose.msra.mxu0 0.0
    %250 = vmatprep.subr.mxu0 0.0
    %251 = vmatpush1.xpose.msra.mxu0 0.0
    %252 = vmatprep.subr.mxu0 0.0
    %253 = vmatpush1.xpose.msra.mxu0 0.0
    %254 = vmatprep.subr.mxu0 0.0
    %255 = vmatpush1.xpose.msra.mxu0 0.0
    %256 = vmatprep.subr.mxu0 0.0
    %257 = vmatpush1.xpose.msra.mxu0 0.0
    %258 = vmatprep.subr.mxu0 0.0
    %259 = vmatpush1.xpose.msra.mxu0 0.0
    %260 = vmatprep.subr.mxu0 0.0
    %261 = vmatpush1.xpose.msra.mxu0 0.0
    %262 = vmatprep.subr.mxu0 0.0
    %263 = vmatpush1.xpose.msra.mxu0 0.0
    %264 = vmatprep.subr.mxu0 0.0
    %265 = vmatpush1.xpose.msra.mxu0 0.0
    %266 = vmatprep.subr.mxu0 0.0
    %267 = vmatpush1.xpose.msra.mxu0 0.0
    %268 = vmatprep.subr.mxu0 0.0
    %269 = vmatpush1.xpose.msra.mxu0 0.0
    %270 = vmatprep.subr.mxu0 0.0
    %271 = vmatpush1.xpose.msra.mxu0 0.0
    %272 = vmatprep.subr.mxu0 0.0
    %273 = vmatpush1.xpose.msra.mxu0 0.0
    %274 = vmatprep.subr.mxu0 0.0
    %275 = vmatpush1.xpose.msra.mxu0 0.0
    %276 = vmatprep.subr.mxu0 0.0
    %277 = vmatpush1.xpose.msra.mxu0 0.0
    %278 = vmatprep.subr.mxu0 0.0
    %279 = vmatpush1.xpose.msra.mxu0 0.0
    %280 = vmatprep.subr.mxu0 0.0
    %281 = vmatpush1.xpose.msra.mxu0 0.0
    %282 = vmatprep.subr.mxu0 0.0
    %283 = vmatpush1.xpose.msra.mxu0 0.0
    %284 = vmatprep.subr.mxu0 0.0
    %285 = vmatpush1.xpose.msra.mxu0 0.0
    %286 = vmatprep.subr.mxu0 0.0
    %287 = vmatpush1.xpose.msra.mxu0 0.0
    %288 = vmatprep.subr.mxu0 0.0
    %289 = vmatpush1.xpose.msra.mxu0 0.0
    %290 = vmatprep.subr.mxu0 0.0
    %291 = vmatpush1.xpose.msra.mxu0 0.0
    %292 = vmatprep.mubr.f32.mxu0 0.0
    %293 = vmatmul.mubr.f32.gmra.mrb[0].mxu0 %v223
    %v294 = vpop.f32.mrb[0].mxu0
    %v295 = vadd.f32 0.0, %v294
    %v296 = vpop.f32.mrb[0].mxu0
    %297 = vdwg.mxu0
    %v298 = vlaneseq
    %v299 = vshrl.u32 %v298, 7
    %v300 = vsub.s32 0, %v299
    %v301 = vrot.slane %v64, %v300
    %v302 = vmul.f32 %v212, %v301
    %v303 = vsel %vm222, %v302, 0.0
    %304 = vadd.xlane.f32.xlu0 %v303
    %v305 = vpop.xlane.xlu0 %304
    %v306 = vlaneseq
    %v307 = vshrl.u32 %v306, 7
    %v308 = vsub.s32 0, %v307
    %v309 = vrot.slane %v295, %v308
    %v310 = vadd.f32 %v305, %v309
    %v311 = vmul.f32 %v310, 0.2
    %v312 = vmax.f32 %v310, %v311
    %vm313 = vcmp.gt.bf16.partialorder %v56, 0
    %v314 = vsel %vm313, 65537, 0
    %v315 = vunpack.c.l.b16 %v314
    %vm316 = vcmp.ne.s32.totalorder %v315, 0
    %v317 = vsel %vm316, %v312, -1e+30
    %v318 = vsel %vm68, %v317, -inf
    %319 = vmax.xlane.f32.xlu0 %v318
    %v320 = vpop.xlane.xlu0 %319
    %v321 = vsub.f32 %v317, %v320
    %v322 = vmul.f32 %v321, 1.442695
    %v323 = vpow.pop %v322
    %v324 = vpack.c.bf16 %v323, %v323
    %v325 = vlaneseq
    %v326 = vshrl.u32 %v325, 7
    %v327 = vsub.s32 4, %v326
    %v328 = vrot.slane %v64, %v327
    %vm329 = vcmask 1046528
    %v331 = vsel %vm329, %v59, 0
    %333 = vmatprep.subr.mxu0 0.0
    %334 = vmatpush1.msra.mxu0 %v58
    %335 = vmatprep.subr.mxu0 0.0
    %336 = vmatpush1.msra.mxu0 %v331
    %337 = vmatprep.subr.mxu0 0.0
    %338 = vmatpush1.msra.mxu0 0.0
    %339 = vmatprep.subr.mxu0 0.0
    %340 = vmatpush1.msra.mxu0 0.0
    %341 = vmatprep.subr.mxu0 0.0
    %342 = vmatpush1.msra.mxu0 0.0
    %343 = vmatprep.subr.mxu0 0.0
    %344 = vmatpush1.msra.mxu0 0.0
    %345 = vmatprep.subr.mxu0 0.0
    %346 = vmatpush1.msra.mxu0 0.0
    %347 = vmatprep.subr.mxu0 0.0
    %348 = vmatpush1.msra.mxu0 0.0
    %349 = vmatprep.subr.mxu0 0.0
    %350 = vmatpush1.msra.mxu0 0.0
    %351 = vmatprep.subr.mxu0 0.0
    %352 = vmatpush1.msra.mxu0 0.0
    %353 = vmatprep.subr.mxu0 0.0
    %354 = vmatpush1.msra.mxu0 0.0
    %355 = vmatprep.subr.mxu0 0.0
    %356 = vmatpush1.msra.mxu0 0.0
    %357 = vmatprep.subr.mxu0 0.0
    %358 = vmatpush1.msra.mxu0 0.0
    %359 = vmatprep.subr.mxu0 0.0
    %360 = vmatpush1.msra.mxu0 0.0
    %361 = vmatprep.subr.mxu0 0.0
    %362 = vmatpush1.msra.mxu0 0.0
    %363 = vmatprep.subr.mxu0 0.0
    %364 = vmatpush1.msra.mxu0 0.0
    %365 = vmatprep.subr.mxu0 0.0
    %366 = vmatpush1.msra.mxu0 0.0
    %367 = vmatprep.subr.mxu0 0.0
    %368 = vmatpush1.msra.mxu0 0.0
    %369 = vmatprep.subr.mxu0 0.0
    %370 = vmatpush1.msra.mxu0 0.0
    %371 = vmatprep.subr.mxu0 0.0
    %372 = vmatpush1.msra.mxu0 0.0
    %373 = vmatprep.subr.mxu0 0.0
    %374 = vmatpush1.msra.mxu0 0.0
    %375 = vmatprep.subr.mxu0 0.0
    %376 = vmatpush1.msra.mxu0 0.0
    %377 = vmatprep.subr.mxu0 0.0
    %378 = vmatpush1.msra.mxu0 0.0
    %379 = vmatprep.subr.mxu0 0.0
    %380 = vmatpush1.msra.mxu0 0.0
    %381 = vmatprep.subr.mxu0 0.0
    %382 = vmatpush1.msra.mxu0 0.0
    %383 = vmatprep.subr.mxu0 0.0
    %384 = vmatpush1.msra.mxu0 0.0
    %385 = vmatprep.subr.mxu0 0.0
    %386 = vmatpush1.msra.mxu0 0.0
    %387 = vmatprep.subr.mxu0 0.0
    %388 = vmatpush1.msra.mxu0 0.0
    %389 = vmatprep.subr.mxu0 0.0
    %390 = vmatpush1.msra.mxu0 0.0
    %391 = vmatprep.subr.mxu0 0.0
    %392 = vmatpush1.msra.mxu0 0.0
    %393 = vmatprep.subr.mxu0 0.0
    %394 = vmatpush1.msra.mxu0 0.0
    %395 = vmatprep.subr.mxu0 0.0
    %396 = vmatpush1.msra.mxu0 0.0
    %397 = vmatprep.mubr.f32.mxu0 0.0
    %398 = vmatmul.mubr.f32.gmra.mrb[0].mxu0 %v226
    %v399 = vpop.f32.mrb[0].mxu0
    %v400 = vadd.f32 %v328, %v399
    %v401 = vpop.f32.mrb[0].mxu0
    %402 = vdwg.mxu0
    %v403 = vpack.c.bf16 %v400, %v400
    %v405 = vsel %vm68, %v324, 0
    %vm407 = vcmask 1043456
    %v409 = vsel %vm407, %v403, 0
    %411 = vmatprep.subr.bf16.mxu0 0
    %412 = vmatpush1.bf16.msra.mxu0 %v409
    %413 = vmatprep.subr.bf16.mxu0 0
    %414 = vmatpush1.bf16.msra.mxu0 0
    %415 = vmatprep.subr.bf16.mxu0 0
    %416 = vmatpush1.bf16.msra.mxu0 0
    %417 = vmatprep.subr.bf16.mxu0 0
    %418 = vmatpush1.bf16.msra.mxu0 0
    %419 = vmatprep.subr.bf16.mxu0 0
    %420 = vmatpush1.bf16.msra.mxu0 0
    %421 = vmatprep.subr.bf16.mxu0 0
    %422 = vmatpush1.bf16.msra.mxu0 0
    %423 = vmatprep.subr.bf16.mxu0 0
    %424 = vmatpush1.bf16.msra.mxu0 0
    %425 = vmatprep.subr.bf16.mxu0 0
    %426 = vmatpush1.bf16.msra.mxu0 0
    %427 = vmatprep.subr.bf16.mxu0 0
    %428 = vmatpush1.bf16.msra.mxu0 0
    %429 = vmatprep.subr.bf16.mxu0 0
    %430 = vmatpush1.bf16.msra.mxu0 0
    %431 = vmatprep.subr.bf16.mxu0 0
    %432 = vmatpush1.bf16.msra.mxu0 0
    %433 = vmatprep.subr.bf16.mxu0 0
    %434 = vmatpush1.bf16.msra.mxu0 0
    %435 = vmatprep.subr.bf16.mxu0 0
    %436 = vmatpush1.bf16.msra.mxu0 0
    %437 = vmatprep.subr.bf16.mxu0 0
    %438 = vmatpush1.bf16.msra.mxu0 0
    %439 = vmatprep.subr.bf16.mxu0 0
    %440 = vmatpush1.bf16.msra.mxu0 0
    %441 = vmatprep.subr.bf16.mxu0 0
    %442 = vmatpush1.bf16.msra.mxu0 0
    %443 = vmatprep.mubr.bf16.mxu0 0
    %444 = vmatmul.mubr.bf16.gmra.mrb[0].mxu0 %v405
    %v445 = vpop.f32.mrb[0].mxu0
    %v446 = vadd.f32 0.0, %v445
    %v447 = vpop.f32.mrb[0].mxu0
    %v448 = vpop.f32.mrb[0].mxu0
    %v449 = vpop.f32.mrb[0].mxu0
    %450 = vdwg.mxu0
    %v451 = vrcp.pop %v446
    %453 = vset.pattern.permute.xlu0 15
    %454 = vperm.xlu0 %453, %v451
    %v455 = vpop.permute.xlu0 %454
    %v457 = vmul.f32 %v446, %v455
    %v458 = vadd.f32 %v219, %v457
    %v459 = vrot.slane %v63, 6
    %460 = vrot.lane.b32.xlu0 %v139, 113
    %v461 = vpop.permute.xlu0 %460
    %v462 = vsel %vm222, %v459, 0
    %v464 = vsel %vm222, %v461, 0
    %466 = vmatprep.subr.mxu0 0.0
    %467 = vmatpush1.xpose.msra.mxu0 %v464
    %468 = vmatprep.subr.mxu0 0.0
    %469 = vmatpush1.xpose.msra.mxu0 0.0
    %470 = vmatprep.subr.mxu0 0.0
    %471 = vmatpush1.xpose.msra.mxu0 0.0
    %472 = vmatprep.subr.mxu0 0.0
    %473 = vmatpush1.xpose.msra.mxu0 0.0
    %474 = vmatprep.subr.mxu0 0.0
    %475 = vmatpush1.xpose.msra.mxu0 0.0
    %476 = vmatprep.subr.mxu0 0.0
    %477 = vmatpush1.xpose.msra.mxu0 0.0
    %478 = vmatprep.subr.mxu0 0.0
    %479 = vmatpush1.xpose.msra.mxu0 0.0
    %480 = vmatprep.subr.mxu0 0.0
    %481 = vmatpush1.xpose.msra.mxu0 0.0
    %482 = vmatprep.subr.mxu0 0.0
    %483 = vmatpush1.xpose.msra.mxu0 0.0
    %484 = vmatprep.subr.mxu0 0.0
    %485 = vmatpush1.xpose.msra.mxu0 0.0
    %486 = vmatprep.subr.mxu0 0.0
    %487 = vmatpush1.xpose.msra.mxu0 0.0
    %488 = vmatprep.subr.mxu0 0.0
    %489 = vmatpush1.xpose.msra.mxu0 0.0
    %490 = vmatprep.subr.mxu0 0.0
    %491 = vmatpush1.xpose.msra.mxu0 0.0
    %492 = vmatprep.subr.mxu0 0.0
    %493 = vmatpush1.xpose.msra.mxu0 0.0
    %494 = vmatprep.subr.mxu0 0.0
    %495 = vmatpush1.xpose.msra.mxu0 0.0
    %496 = vmatprep.subr.mxu0 0.0
    %497 = vmatpush1.xpose.msra.mxu0 0.0
    %498 = vmatprep.subr.mxu0 0.0
    %499 = vmatpush1.xpose.msra.mxu0 0.0
    %500 = vmatprep.subr.mxu0 0.0
    %501 = vmatpush1.xpose.msra.mxu0 0.0
    %502 = vmatprep.subr.mxu0 0.0
    %503 = vmatpush1.xpose.msra.mxu0 0.0
    %504 = vmatprep.subr.mxu0 0.0
    %505 = vmatpush1.xpose.msra.mxu0 0.0
    %506 = vmatprep.subr.mxu0 0.0
    %507 = vmatpush1.xpose.msra.mxu0 0.0
    %508 = vmatprep.subr.mxu0 0.0
    %509 = vmatpush1.xpose.msra.mxu0 0.0
    %510 = vmatprep.subr.mxu0 0.0
    %511 = vmatpush1.xpose.msra.mxu0 0.0
    %512 = vmatprep.subr.mxu0 0.0
    %513 = vmatpush1.xpose.msra.mxu0 0.0
    %514 = vmatprep.subr.mxu0 0.0
    %515 = vmatpush1.xpose.msra.mxu0 0.0
    %516 = vmatprep.subr.mxu0 0.0
    %517 = vmatpush1.xpose.msra.mxu0 0.0
    %518 = vmatprep.subr.mxu0 0.0
    %519 = vmatpush1.xpose.msra.mxu0 0.0
    %520 = vmatprep.subr.mxu0 0.0
    %521 = vmatpush1.xpose.msra.mxu0 0.0
    %522 = vmatprep.subr.mxu0 0.0
    %523 = vmatpush1.xpose.msra.mxu0 0.0
    %524 = vmatprep.subr.mxu0 0.0
    %525 = vmatpush1.xpose.msra.mxu0 0.0
    %526 = vmatprep.subr.mxu0 0.0
    %527 = vmatpush1.xpose.msra.mxu0 0.0
    %528 = vmatprep.subr.mxu0 0.0
    %529 = vmatpush1.xpose.msra.mxu0 0.0
    %530 = vmatprep.mubr.f32.mxu0 0.0
    %531 = vmatmul.mubr.f32.gmra.mrb[0].mxu0 %v462
    %v532 = vpop.f32.mrb[0].mxu0
    %v533 = vadd.f32 0.0, %v532
    %v534 = vpop.f32.mrb[0].mxu0
    %535 = vdwg.mxu0
    %v536 = vlaneseq
    %v537 = vshrl.u32 %v536, 7
    %v538 = vsub.s32 1, %v537
    %v539 = vrot.slane %v64, %v538
    %541 = vrot.lane.b32.xlu0 %v539, 15
    %v542 = vpop.permute.xlu0 %541
    %v544 = vmul.f32 %v212, %v542
    %546 = vrot.lane.b32.xlu0 %v544, 113
    %v547 = vpop.permute.xlu0 %546
    %v549 = vsel %vm222, %v547, 0.0
    %550 = vadd.xlane.f32.xlu0 %v549
    %v551 = vpop.xlane.xlu0 %550
    %v552 = vlaneseq
    %v553 = vshrl.u32 %v552, 7
    %v554 = vsub.s32 0, %v553
    %v555 = vrot.slane %v533, %v554
    %v556 = vadd.f32 %v551, %v555
    %v557 = vmul.f32 %v556, 0.2
    %v558 = vmax.f32 %v556, %v557
    %v559 = vsel %vm316, %v558, -1e+30
    %v560 = vsel %vm68, %v559, -inf
    %561 = vmax.xlane.f32.xlu0 %v560
    %v562 = vpop.xlane.xlu0 %561
    %v563 = vsub.f32 %v559, %v562
    %v564 = vmul.f32 %v563, 1.442695
    %v565 = vpow.pop %v564
    %v566 = vpack.c.bf16 %v565, %v565
    %vm569 = vcmask 1040384
    %v570 = vrot.slane %v59, 7
    %v571 = vrot.slane %v60, 7
    %v572 = vsel %vm569, %v570, %v571
    %v573 = vrot.slane %v61, 7
    %v574 = vsel %vm569, %v571, %v573
    %v576 = vsel %vm329, %v574, 0
    %578 = vmatprep.subr.mxu0 0.0
    %579 = vmatpush1.msra.mxu0 %v572
    %580 = vmatprep.subr.mxu0 0.0
    %581 = vmatpush1.msra.mxu0 %v576
    %582 = vmatprep.subr.mxu0 0.0
    %583 = vmatpush1.msra.mxu0 0.0
    %584 = vmatprep.subr.mxu0 0.0
    %585 = vmatpush1.msra.mxu0 0.0
    %586 = vmatprep.subr.mxu0 0.0
    %587 = vmatpush1.msra.mxu0 0.0
    %588 = vmatprep.subr.mxu0 0.0
    %589 = vmatpush1.msra.mxu0 0.0
    %590 = vmatprep.subr.mxu0 0.0
    %591 = vmatpush1.msra.mxu0 0.0
    %592 = vmatprep.subr.mxu0 0.0
    %593 = vmatpush1.msra.mxu0 0.0
    %594 = vmatprep.subr.mxu0 0.0
    %595 = vmatpush1.msra.mxu0 0.0
    %596 = vmatprep.subr.mxu0 0.0
    %597 = vmatpush1.msra.mxu0 0.0
    %598 = vmatprep.subr.mxu0 0.0
    %599 = vmatpush1.msra.mxu0 0.0
    %600 = vmatprep.subr.mxu0 0.0
    %601 = vmatpush1.msra.mxu0 0.0
    %602 = vmatprep.subr.mxu0 0.0
    %603 = vmatpush1.msra.mxu0 0.0
    %604 = vmatprep.subr.mxu0 0.0
    %605 = vmatpush1.msra.mxu0 0.0
    %606 = vmatprep.subr.mxu0 0.0
    %607 = vmatpush1.msra.mxu0 0.0
    %608 = vmatprep.subr.mxu0 0.0
    %609 = vmatpush1.msra.mxu0 0.0
    %610 = vmatprep.subr.mxu0 0.0
    %611 = vmatpush1.msra.mxu0 0.0
    %612 = vmatprep.subr.mxu0 0.0
    %613 = vmatpush1.msra.mxu0 0.0
    %614 = vmatprep.subr.mxu0 0.0
    %615 = vmatpush1.msra.mxu0 0.0
    %616 = vmatprep.subr.mxu0 0.0
    %617 = vmatpush1.msra.mxu0 0.0
    %618 = vmatprep.subr.mxu0 0.0
    %619 = vmatpush1.msra.mxu0 0.0
    %620 = vmatprep.subr.mxu0 0.0
    %621 = vmatpush1.msra.mxu0 0.0
    %622 = vmatprep.subr.mxu0 0.0
    %623 = vmatpush1.msra.mxu0 0.0
    %624 = vmatprep.subr.mxu0 0.0
    %625 = vmatpush1.msra.mxu0 0.0
    %626 = vmatprep.subr.mxu0 0.0
    %627 = vmatpush1.msra.mxu0 0.0
    %628 = vmatprep.subr.mxu0 0.0
    %629 = vmatpush1.msra.mxu0 0.0
    %630 = vmatprep.subr.mxu0 0.0
    %631 = vmatpush1.msra.mxu0 0.0
    %632 = vmatprep.subr.mxu0 0.0
    %633 = vmatpush1.msra.mxu0 0.0
    %634 = vmatprep.subr.mxu0 0.0
    %635 = vmatpush1.msra.mxu0 0.0
    %636 = vmatprep.subr.mxu0 0.0
    %637 = vmatpush1.msra.mxu0 0.0
    %638 = vmatprep.subr.mxu0 0.0
    %639 = vmatpush1.msra.mxu0 0.0
    %640 = vmatprep.subr.mxu0 0.0
    %641 = vmatpush1.msra.mxu0 0.0
    %642 = vmatprep.mubr.f32.mxu0 0.0
    %643 = vmatmul.mubr.f32.gmra.mrb[0].mxu0 %v464
    %v644 = vpop.f32.mrb[0].mxu0
    %v645 = vadd.f32 %v328, %v644
    %v646 = vpop.f32.mrb[0].mxu0
    %647 = vdwg.mxu0
    %v648 = vpack.c.bf16 %v645, %v645
    %v650 = vsel %vm68, %v566, 0
    %v653 = vsel %vm407, %v648, 0
    %655 = vmatprep.subr.bf16.mxu0 0
    %656 = vmatpush1.bf16.msra.mxu0 %v653
    %657 = vmatprep.subr.bf16.mxu0 0
    %658 = vmatpush1.bf16.msra.mxu0 0
    %659 = vmatprep.subr.bf16.mxu0 0
    %660 = vmatpush1.bf16.msra.mxu0 0
    %661 = vmatprep.subr.bf16.mxu0 0
    %662 = vmatpush1.bf16.msra.mxu0 0
    %663 = vmatprep.subr.bf16.mxu0 0
    %664 = vmatpush1.bf16.msra.mxu0 0
    %665 = vmatprep.subr.bf16.mxu0 0
    %666 = vmatpush1.bf16.msra.mxu0 0
    %667 = vmatprep.subr.bf16.mxu0 0
    %668 = vmatpush1.bf16.msra.mxu0 0
    %669 = vmatprep.subr.bf16.mxu0 0
    %670 = vmatpush1.bf16.msra.mxu0 0
    %671 = vmatprep.subr.bf16.mxu0 0
    %672 = vmatpush1.bf16.msra.mxu0 0
    %673 = vmatprep.subr.bf16.mxu0 0
    %674 = vmatpush1.bf16.msra.mxu0 0
    %675 = vmatprep.subr.bf16.mxu0 0
    %676 = vmatpush1.bf16.msra.mxu0 0
    %677 = vmatprep.subr.bf16.mxu0 0
    %678 = vmatpush1.bf16.msra.mxu0 0
    %679 = vmatprep.subr.bf16.mxu0 0
    %680 = vmatpush1.bf16.msra.mxu0 0
    %681 = vmatprep.subr.bf16.mxu0 0
    %682 = vmatpush1.bf16.msra.mxu0 0
    %683 = vmatprep.subr.bf16.mxu0 0
    %684 = vmatpush1.bf16.msra.mxu0 0
    %685 = vmatprep.subr.bf16.mxu0 0
    %686 = vmatpush1.bf16.msra.mxu0 0
    %687 = vmatprep.mubr.bf16.mxu0 0
    %688 = vmatmul.mubr.bf16.gmra.mrb[0].mxu0 %v650
    %v689 = vpop.f32.mrb[0].mxu0
    %v690 = vadd.f32 0.0, %v689
    %v691 = vpop.f32.mrb[0].mxu0
    %v692 = vpop.f32.mrb[0].mxu0
    %v693 = vpop.f32.mrb[0].mxu0
    %694 = vdwg.mxu0
    %v695 = vrcp.pop %v690
    %697 = vset.pattern.permute.xlu0 15
    %698 = vperm.xlu0 %697, %v695
    %v699 = vpop.permute.xlu0 %698
    %v701 = vmul.f32 %v690, %v699
    %v702 = vadd.f32 %v458, %v701
    %v703 = vrot.slane %v63, 7
    %704 = vrot.lane.b32.xlu0 %v139, 98
    %v705 = vpop.permute.xlu0 %704
    %v706 = vsel %vm222, %v703, 0
    %v708 = vsel %vm222, %v705, 0
    %710 = vmatprep.subr.mxu0 0.0
    %711 = vmatpush1.xpose.msra.mxu0 %v708
    %712 = vmatprep.subr.mxu0 0.0
    %713 = vmatpush1.xpose.msra.mxu0 0.0
    %714 = vmatprep.subr.mxu0 0.0
    %715 = vmatpush1.xpose.msra.mxu0 0.0
    %716 = vmatprep.subr.mxu0 0.0
    %717 = vmatpush1.xpose.msra.mxu0 0.0
    %718 = vmatprep.subr.mxu0 0.0
    %719 = vmatpush1.xpose.msra.mxu0 0.0
    %720 = vmatprep.subr.mxu0 0.0
    %721 = vmatpush1.xpose.msra.mxu0 0.0
    %722 = vmatprep.subr.mxu0 0.0
    %723 = vmatpush1.xpose.msra.mxu0 0.0
    %724 = vmatprep.subr.mxu0 0.0
    %725 = vmatpush1.xpose.msra.mxu0 0.0
    %726 = vmatprep.subr.mxu0 0.0
    %727 = vmatpush1.xpose.msra.mxu0 0.0
    %728 = vmatprep.subr.mxu0 0.0
    %729 = vmatpush1.xpose.msra.mxu0 0.0
    %730 = vmatprep.subr.mxu0 0.0
    %731 = vmatpush1.xpose.msra.mxu0 0.0
    %732 = vmatprep.subr.mxu0 0.0
    %733 = vmatpush1.xpose.msra.mxu0 0.0
    %734 = vmatprep.subr.mxu0 0.0
    %735 = vmatpush1.xpose.msra.mxu0 0.0
    %736 = vmatprep.subr.mxu0 0.0
    %737 = vmatpush1.xpose.msra.mxu0 0.0
    %738 = vmatprep.subr.mxu0 0.0
    %739 = vmatpush1.xpose.msra.mxu0 0.0
    %740 = vmatprep.subr.mxu0 0.0
    %741 = vmatpush1.xpose.msra.mxu0 0.0
    %742 = vmatprep.subr.mxu0 0.0
    %743 = vmatpush1.xpose.msra.mxu0 0.0
    %744 = vmatprep.subr.mxu0 0.0
    %745 = vmatpush1.xpose.msra.mxu0 0.0
    %746 = vmatprep.subr.mxu0 0.0
    %747 = vmatpush1.xpose.msra.mxu0 0.0
    %748 = vmatprep.subr.mxu0 0.0
    %749 = vmatpush1.xpose.msra.mxu0 0.0
    %750 = vmatprep.subr.mxu0 0.0
    %751 = vmatpush1.xpose.msra.mxu0 0.0
    %752 = vmatprep.subr.mxu0 0.0
    %753 = vmatpush1.xpose.msra.mxu0 0.0
    %754 = vmatprep.subr.mxu0 0.0
    %755 = vmatpush1.xpose.msra.mxu0 0.0
    %756 = vmatprep.subr.mxu0 0.0
    %757 = vmatpush1.xpose.msra.mxu0 0.0
    %758 = vmatprep.subr.mxu0 0.0
    %759 = vmatpush1.xpose.msra.mxu0 0.0
    %760 = vmatprep.subr.mxu0 0.0
    %761 = vmatpush1.xpose.msra.mxu0 0.0
    %762 = vmatprep.subr.mxu0 0.0
    %763 = vmatpush1.xpose.msra.mxu0 0.0
    %764 = vmatprep.subr.mxu0 0.0
    %765 = vmatpush1.xpose.msra.mxu0 0.0
    %766 = vmatprep.subr.mxu0 0.0
    %767 = vmatpush1.xpose.msra.mxu0 0.0
    %768 = vmatprep.subr.mxu0 0.0
    %769 = vmatpush1.xpose.msra.mxu0 0.0
    %770 = vmatprep.subr.mxu0 0.0
    %771 = vmatpush1.xpose.msra.mxu0 0.0
    %772 = vmatprep.subr.mxu0 0.0
    %773 = vmatpush1.xpose.msra.mxu0 0.0
    %774 = vmatprep.mubr.f32.mxu0 0.0
    %775 = vmatmul.mubr.f32.gmra.mrb[0].mxu0 %v706
    %v776 = vpop.f32.mrb[0].mxu0
    %v777 = vadd.f32 0.0, %v776
    %v778 = vpop.f32.mrb[0].mxu0
    %779 = vdwg.mxu0
    %v780 = vlaneseq
    %v781 = vshrl.u32 %v780, 7
    %v782 = vsub.s32 2, %v781
    %v783 = vrot.slane %v64, %v782
    %785 = vrot.lane.b32.xlu0 %v783, 30
    %v786 = vpop.permute.xlu0 %785
    %v788 = vmul.f32 %v212, %v786
    %790 = vrot.lane.b32.xlu0 %v788, 98
    %v791 = vpop.permute.xlu0 %790
    %v793 = vsel %vm222, %v791, 0.0
    %794 = vadd.xlane.f32.xlu0 %v793
    %v795 = vpop.xlane.xlu0 %794
    %v796 = vlaneseq
    %v797 = vshrl.u32 %v796, 7
    %v798 = vsub.s32 0, %v797
    %v799 = vrot.slane %v777, %v798
    %v800 = vadd.f32 %v795, %v799
    %v801 = vmul.f32 %v800, 0.2
    %v802 = vmax.f32 %v800, %v801
    %v803 = vsel %vm316, %v802, -1e+30
    %v804 = vsel %vm68, %v803, -inf
    %805 = vmax.xlane.f32.xlu0 %v804
    %v806 = vpop.xlane.xlu0 %805
    %v807 = vsub.f32 %v803, %v806
    %v808 = vmul.f32 %v807, 1.442695
    %v809 = vpow.pop %v808
    %v810 = vpack.c.bf16 %v809, %v809
    %vm812 = vcmask 1041408
    %v813 = vrot.slane %v61, 6
    %v814 = vrot.slane %v62, 6
    %v815 = vsel %vm812, %v813, %v814
    %v816 = vsel %vm812, %v814, %v459
    %v818 = vsel %vm329, %v816, 0
    %820 = vmatprep.subr.mxu0 0.0
    %821 = vmatpush1.msra.mxu0 %v815
    %822 = vmatprep.subr.mxu0 0.0
    %823 = vmatpush1.msra.mxu0 %v818
    %824 = vmatprep.subr.mxu0 0.0
    %825 = vmatpush1.msra.mxu0 0.0
    %826 = vmatprep.subr.mxu0 0.0
    %827 = vmatpush1.msra.mxu0 0.0
    %828 = vmatprep.subr.mxu0 0.0
    %829 = vmatpush1.msra.mxu0 0.0
    %830 = vmatprep.subr.mxu0 0.0
    %831 = vmatpush1.msra.mxu0 0.0
    %832 = vmatprep.subr.mxu0 0.0
    %833 = vmatpush1.msra.mxu0 0.0
    %834 = vmatprep.subr.mxu0 0.0
    %835 = vmatpush1.msra.mxu0 0.0
    %836 = vmatprep.subr.mxu0 0.0
    %837 = vmatpush1.msra.mxu0 0.0
    %838 = vmatprep.subr.mxu0 0.0
    %839 = vmatpush1.msra.mxu0 0.0
    %840 = vmatprep.subr.mxu0 0.0
    %841 = vmatpush1.msra.mxu0 0.0
    %842 = vmatprep.subr.mxu0 0.0
    %843 = vmatpush1.msra.mxu0 0.0
    %844 = vmatprep.subr.mxu0 0.0
    %845 = vmatpush1.msra.mxu0 0.0
    %846 = vmatprep.subr.mxu0 0.0
    %847 = vmatpush1.msra.mxu0 0.0
    %848 = vmatprep.subr.mxu0 0.0
    %849 = vmatpush1.msra.mxu0 0.0
    %850 = vmatprep.subr.mxu0 0.0
    %851 = vmatpush1.msra.mxu0 0.0
    %852 = vmatprep.subr.mxu0 0.0
    %853 = vmatpush1.msra.mxu0 0.0
    %854 = vmatprep.subr.mxu0 0.0
    %855 = vmatpush1.msra.mxu0 0.0
    %856 = vmatprep.subr.mxu0 0.0
    %857 = vmatpush1.msra.mxu0 0.0
    %858 = vmatprep.subr.mxu0 0.0
    %859 = vmatpush1.msra.mxu0 0.0
    %860 = vmatprep.subr.mxu0 0.0
    %861 = vmatpush1.msra.mxu0 0.0
    %862 = vmatprep.subr.mxu0 0.0
    %863 = vmatpush1.msra.mxu0 0.0
    %864 = vmatprep.subr.mxu0 0.0
    %865 = vmatpush1.msra.mxu0 0.0
    %866 = vmatprep.subr.mxu0 0.0
    %867 = vmatpush1.msra.mxu0 0.0
    %868 = vmatprep.subr.mxu0 0.0
    %869 = vmatpush1.msra.mxu0 0.0
    %870 = vmatprep.subr.mxu0 0.0
    %871 = vmatpush1.msra.mxu0 0.0
    %872 = vmatprep.subr.mxu0 0.0
    %873 = vmatpush1.msra.mxu0 0.0
    %874 = vmatprep.subr.mxu0 0.0
    %875 = vmatpush1.msra.mxu0 0.0
    %876 = vmatprep.subr.mxu0 0.0
    %877 = vmatpush1.msra.mxu0 0.0
    %878 = vmatprep.subr.mxu0 0.0
    %879 = vmatpush1.msra.mxu0 0.0
    %880 = vmatprep.subr.mxu0 0.0
    %881 = vmatpush1.msra.mxu0 0.0
    %882 = vmatprep.subr.mxu0 0.0
    %883 = vmatpush1.msra.mxu0 0.0
    %884 = vmatprep.mubr.f32.mxu0 0.0
    %885 = vmatmul.mubr.f32.gmra.mrb[0].mxu0 %v708
    %v886 = vpop.f32.mrb[0].mxu0
    %v887 = vadd.f32 %v328, %v886
    %v888 = vpop.f32.mrb[0].mxu0
    %889 = vdwg.mxu0
    %v890 = vpack.c.bf16 %v887, %v887
    %v892 = vsel %vm68, %v810, 0
    %v895 = vsel %vm407, %v890, 0
    %897 = vmatprep.subr.bf16.mxu0 0
    %898 = vmatpush1.bf16.msra.mxu0 %v895
    %899 = vmatprep.subr.bf16.mxu0 0
    %900 = vmatpush1.bf16.msra.mxu0 0
    %901 = vmatprep.subr.bf16.mxu0 0
    %902 = vmatpush1.bf16.msra.mxu0 0
    %903 = vmatprep.subr.bf16.mxu0 0
    %904 = vmatpush1.bf16.msra.mxu0 0
    %905 = vmatprep.subr.bf16.mxu0 0
    %906 = vmatpush1.bf16.msra.mxu0 0
    %907 = vmatprep.subr.bf16.mxu0 0
    %908 = vmatpush1.bf16.msra.mxu0 0
    %909 = vmatprep.subr.bf16.mxu0 0
    %910 = vmatpush1.bf16.msra.mxu0 0
    %911 = vmatprep.subr.bf16.mxu0 0
    %912 = vmatpush1.bf16.msra.mxu0 0
    %913 = vmatprep.subr.bf16.mxu0 0
    %914 = vmatpush1.bf16.msra.mxu0 0
    %915 = vmatprep.subr.bf16.mxu0 0
    %916 = vmatpush1.bf16.msra.mxu0 0
    %917 = vmatprep.subr.bf16.mxu0 0
    %918 = vmatpush1.bf16.msra.mxu0 0
    %919 = vmatprep.subr.bf16.mxu0 0
    %920 = vmatpush1.bf16.msra.mxu0 0
    %921 = vmatprep.subr.bf16.mxu0 0
    %922 = vmatpush1.bf16.msra.mxu0 0
    %923 = vmatprep.subr.bf16.mxu0 0
    %924 = vmatpush1.bf16.msra.mxu0 0
    %925 = vmatprep.subr.bf16.mxu0 0
    %926 = vmatpush1.bf16.msra.mxu0 0
    %927 = vmatprep.subr.bf16.mxu0 0
    %928 = vmatpush1.bf16.msra.mxu0 0
    %929 = vmatprep.mubr.bf16.mxu0 0
    %930 = vmatmul.mubr.bf16.gmra.mrb[0].mxu0 %v892
    %v931 = vpop.f32.mrb[0].mxu0
    %v932 = vadd.f32 0.0, %v931
    %v933 = vpop.f32.mrb[0].mxu0
    %v934 = vpop.f32.mrb[0].mxu0
    %v935 = vpop.f32.mrb[0].mxu0
    %936 = vdwg.mxu0
    %v937 = vrcp.pop %v932
    %939 = vset.pattern.permute.xlu0 15
    %940 = vperm.xlu0 %939, %v937
    %v941 = vpop.permute.xlu0 %940
    %v943 = vmul.f32 %v932, %v941
    %v944 = vadd.f32 %v702, %v943
    %945 = vst.msk [vmem:[#allocation8] sm:$0xff] %vm222, %v944
    // Predicated region
    $region26: #{tpu_custom_call.1} parent=1 // pred_check
      _
    $region27: #{tpu_custom_call.1} parent=1 // pred_check_branch
      %947 = sbr.rel (0) target = $region29
    $region28: #{tpu_custom_call.1} parent=1 // pred_region
      %s949 = ssub.s32 128, 128
      %950 = vsyncadd [#allocation4], %s949
      %s952 = sshll.u32 [#allocation8], 4
      %s953 = int_to_ptr.vmem [resolvable:$true] %s952
      %955 = dma.vmem_to_hbm [thread:$0]  %s953, 128, %s3, [#allocation4]
    $region29: #{tpu_custom_call.1} parent=1 // pred_fallthru
      _
    // Predicated region
    $region30: #{tpu_custom_call.1} parent=1 // pred_check
      _
    $region31: #{tpu_custom_call.1} parent=1 // pred_check_branch
      %957 = sbr.rel (0) target = $region33
    $region32: #{tpu_custom_call.1} parent=1 // pred_region
      %958 = dma.done [#allocation4], 128
    $region33: #{tpu_custom_call.1} parent=1 // pred_fallthru
      _
    %959 = vsyncpa [#allocation3], 1
    %960 = vsyncpa [#allocation6], 1
    %961 = vsyncpa [#allocation4], 1

</llo_original>
